<compile_context>
chip_gen: v5e
topology: v5e:2x2
jax: 0.10.0
libtpu: 0.0.40
codegen_flags: <defaults>
</compile_context>

<pallas_src>
import functools

import jax
import jax.numpy as jnp
from jax.experimental import pallas as pl
from jax.experimental.pallas import tpu as pltpu


def _round_up(x, m):
    return (x + m - 1) // m * m


def _focal_loss_kernel(x_ref, t_ref, at_ref, loss_ref, *, gamma, n_rows, block_n):
    """One batch tile.

    x_ref:    (C, TN)  logits: classes on sublanes, batch on lanes (lane-dense).
    t_ref:    (1, TN)  int32 targets.
    at_ref:   (1, TN)  f32 per-row alpha (pre-gathered in the wrapper).
    loss_ref: (1, TN)  f32 per-row focal loss.
    """
    x = x_ref[...].astype(jnp.float32)              # cast in-kernel (bf16 inputs OK)
    t = t_ref[...]
    alpha_t = at_ref[...].astype(jnp.float32)

    c, tn = x.shape

    # Per-lane (per batch row) log-sum-exp over the class sublanes.
    m = jnp.max(x, axis=0, keepdims=True)           # (1, TN)
    e = jnp.exp(x - m)                              # (C, TN): the one big EUP pass
    denom = jnp.sum(e, axis=0, keepdims=True)       # (1, TN)

    # Gather the target logit with a one-hot masked sublane reduction.
    class_ids = jax.lax.broadcasted_iota(jnp.int32, (c, tn), 0)
    x_t = jnp.sum(jnp.where(class_ids == t, x, 0.0), axis=0, keepdims=True)

    # log p_t directly: never log(0), no full softmax materialized.
    log_p = x_t - m - jnp.log(denom)                # (1, TN), always <= 0
    p_t = jnp.exp(log_p)
    one_minus_p = 1.0 - p_t

    # (1 - p_t)^gamma.  Integer gamma (default 2) -> plain VALU multiplies via
    # exponentiation by squaring (gamma=2 is a single multiply); EUP stays free.
    if float(gamma) == int(gamma) and int(gamma) >= 0:
        gi = int(gamma)
        if gi == 0:
            w = jnp.ones_like(one_minus_p)
        else:
            w = None
            base = one_minus_p
            while gi:
                if gi & 1:
                    w = base if w is None else w * base
                gi >>= 1
                if gi:
                    base = base * base
    else:
        w = one_minus_p ** jnp.float32(gamma)

    loss = -alpha_t * w * log_p                     # (1, TN)

    # Zero lanes past the real batch in a ragged last block.  Those lanes hold
    # uninitialized VMEM (possibly +/-Inf/NaN), but everything above is strictly
    # per-lane, so masking here (and the ragged output write clip) is enough.
    col = pl.program_id(0) * block_n + jax.lax.broadcasted_iota(
        jnp.int32, (1, tn), 1)
    loss = jnp.where(col < n_rows, loss, 0.0)

    loss_ref[...] = loss.astype(loss_ref.dtype)


def focal_loss(logits, targets, alpha, *, gamma=2, size_average=True,
               block_n=None):
    """Pallas implementation of FocalLoss.forward.

    logits:  (N, C) float (f32 or bf16; DMA'd in its native dtype)
    targets: (N,)   int
    alpha:   (C, 1) or (C,) float per-class scale factor
    """
    n, c = logits.shape
    itemsize = jnp.dtype(logits.dtype).itemsize

    if block_n is None:
        # ~2 MiB of (sublane-padded) logits per block, multiple of 128 lanes.
        # With double buffering plus the small per-row vectors this stays well
        # under v7x's 32 MiB scoped / 64 MiB physical VMEM and v5e's defaults.
        col_bytes = max(_round_up(c, 8) * itemsize, 32)
        budget_n = max(128, ((2 << 20) // col_bytes) // 128 * 128)
        # Keep >= 2 grid steps when the batch is big enough so pipelining and
        # both v7x TensorCores get work.
        two_step_n = max(128, _round_up((n + 1) // 2, 128))
        block_n = min(budget_n, two_step_n)
    if block_n >= n:
        block_n = n                      # single block covering the tiny batch
    grid = (pl.cdiv(n, block_n),)

    # Lane-dense layout: batch on the 128-wide lane axis.  The (N,C)->(C,N)
    # transpose is the only wrapper-side HBM pass left (no pads, no casts).
    # TODO(synk): fold this relayout into the upstream producer of the logits
    # to remove the last extra HBM pass.
    x_t = logits.T                                            # (C, N), native dtype
    t = targets.astype(jnp.int32).reshape(1, n)               # (1, N)
    # Pre-gather per-row alpha (tiny XLA gather) -> lane-dense (1, N) input.
    alpha_row = jnp.asarray(alpha, jnp.float32).reshape(-1)[
        targets.astype(jnp.int32)].reshape(1, n)              # (1, N)

    kernel = functools.partial(
        _focal_loss_kernel, gamma=gamma, n_rows=n, block_n=block_n)

    # Approximate double-buffered VMEM footprint (logits + 3 sublane-padded
    # per-row vectors), with headroom; clamp to stay within v7x physical VMEM.
    block_bytes = (_round_up(c, 8) * block_n * itemsize      # logits block
                   + 3 * 8 * block_n * 4)                    # targets/alpha/loss
    vmem_limit = int(min(64 << 20, max(32 << 20, 2 * block_bytes + (4 << 20))))
    # TODO(synk): for very large class counts (full-C block >> a few MiB), add a
    # class-axis grid dimension with online log-sum-exp scratch instead of
    # holding the whole class axis resident in one block.

    per_row = pl.pallas_call(
        kernel,
        out_shape=jax.ShapeDtypeStruct((1, n), jnp.float32),
        grid_spec=pltpu.PrefetchScalarGridSpec(
            num_scalar_prefetch=0,
            grid=grid,
            in_specs=[
                pl.BlockSpec((c, block_n), lambda i: (0, i)),   # logits tile
                pl.BlockSpec((1, block_n), lambda i: (0, i)),   # targets tile
                pl.BlockSpec((1, block_n), lambda i: (0, i)),   # alpha_t tile
            ],
            out_specs=pl.BlockSpec((1, block_n), lambda i: (0, i)),
        ),
        compiler_params=pltpu.CompilerParams(
            dimension_semantics=("parallel",),
            vmem_limit_bytes=vmem_limit),
        cost_estimate=pl.CostEstimate(
            flops=8 * n * c,
            transcendentals=n * c + 2 * n,
            bytes_accessed=n * c * itemsize + 3 * n * 4),
    )(x_t, t, alpha_row)

    # Tiny final reduction in the wrapper keeps the grid axis fully parallel.
    total = jnp.sum(per_row)
    if size_average:
        return total / jnp.float32(n)
    return total


def _focal_loss_ref(logits, targets, alpha, *, gamma=2, size_average=True):
    """Pure-JAX reference mirroring the PyTorch module."""
    p = jax.nn.softmax(logits.astype(jnp.float32), axis=1)
    mask = jax.nn.one_hot(targets, logits.shape[1], dtype=jnp.float32)
    probs = jnp.sum(p * mask, axis=1, keepdims=True)
    alpha_t = jnp.asarray(alpha, jnp.float32).reshape(-1)[targets].reshape(-1, 1)
    batch_loss = -alpha_t * (1.0 - probs) ** gamma * jnp.log(probs)
    return jnp.mean(batch_loss) if size_average else jnp.sum(batch_loss)


if __name__ == "__main__":
    key = jax.random.PRNGKey(0)

    # Case 1: module defaults — batch=8 observations, class_num=4, gamma=2,
    # alpha = ones(class_num, 1), size_average=True.
    N, C = 8, 4
    k1, k2, k3, k4 = jax.random.split(key, 4)
    logits = jax.random.normal(k1, (N, C), dtype=jnp.float32)
    targets = jax.random.randint(k2, (N,), 0, C, dtype=jnp.int32)
    alpha = jnp.ones((C, 1), dtype=jnp.float32)

    loss = focal_loss(logits, targets, alpha, gamma=2, size_average=True)
    loss = jax.block_until_ready(loss)
    ref = _focal_loss_ref(logits, targets, alpha, gamma=2, size_average=True)
    assert jnp.allclose(loss, ref, rtol=1e-4, atol=1e-6), (loss, ref)

    # Case 2: ragged-edge path (N not a multiple of block_n), non-uniform alpha,
    # sum reduction — exercises the in-kernel lane mask + ragged block handling.
    N2, C2 = 300, 5
    logits2 = jax.random.normal(k3, (N2, C2), dtype=jnp.float32)
    targets2 = jax.random.randint(k4, (N2,), 0, C2, dtype=jnp.int32)
    alpha2 = (0.5 + 0.25 * jnp.arange(C2, dtype=jnp.float32)).reshape(C2, 1)

    loss2 = focal_loss(logits2, targets2, alpha2, gamma=2, size_average=False)
    loss2 = jax.block_until_ready(loss2)
    ref2 = _focal_loss_ref(logits2, targets2, alpha2, gamma=2, size_average=False)
    assert jnp.allclose(loss2, ref2, rtol=1e-4, atol=1e-5), (loss2, ref2)

    print("KERNEL_OK")
</pallas_src>

<mosaic_0001>
module attributes {stable_mosaic.version = 11 : i64} {
  func.func @_focal_loss_kernel(%arg0: i32, %arg1: memref<4x8xf32, #tpu.memory_space<vmem>>, %arg2: memref<1x8xi32, #tpu.memory_space<vmem>>, %arg3: memref<1x8xf32, #tpu.memory_space<vmem>>, %arg4: memref<1x8xf32, #tpu.memory_space<vmem>>) attributes {dimension_semantics = [#tpu.dimension_semantics<parallel>], iteration_bounds = array<i64: 1>, scalar_prefetch = 0 : i64, scratch_operands = 0 : i64, tpu.core_type = #tpu.core_type<tc>, window_params = [{transform_indices = @transform_0, window_bounds = array<i64: 4, 8>}, {transform_indices = @transform_1, window_bounds = array<i64: 1, 8>}, {transform_indices = @transform_2, window_bounds = array<i64: 1, 8>}, {transform_indices = @transform_3, window_bounds = array<i64: 1, 8>}]} {
    %c0 = arith.constant 0 : index
    %c0_0 = arith.constant 0 : index
    %0 = vector.load %arg1[%c0, %c0_0] : memref<4x8xf32, #tpu.memory_space<vmem>>, vector<4x8xf32>
    %c0_1 = arith.constant 0 : index
    %c0_2 = arith.constant 0 : index
    %1 = vector.load %arg2[%c0_1, %c0_2] : memref<1x8xi32, #tpu.memory_space<vmem>>, vector<1x8xi32>
    %c0_3 = arith.constant 0 : index
    %c0_4 = arith.constant 0 : index
    %2 = vector.load %arg3[%c0_3, %c0_4] : memref<1x8xf32, #tpu.memory_space<vmem>>, vector<1x8xf32>
    %cst = arith.constant dense<0xFF800000> : vector<8xf32>
    %3 = vector.multi_reduction <maximumf>, %0, %cst [0] : vector<4x8xf32> to vector<8xf32>
    %4 = vector.shape_cast %3 : vector<8xf32> to vector<1x8xf32>
    %5 = vector.broadcast %4 : vector<1x8xf32> to vector<4x8xf32>
    %6 = arith.subf %0, %5 : vector<4x8xf32>
    %7 = math.exp %6 : vector<4x8xf32>
    %cst_5 = arith.constant dense<0.000000e+00> : vector<8xf32>
    %8 = vector.multi_reduction <add>, %7, %cst_5 [0] : vector<4x8xf32> to vector<8xf32>
    %9 = vector.shape_cast %8 : vector<8xf32> to vector<1x8xf32>
    %10 = tpu.iota {dimensions = array<i32: 0>} : vector<4x8xi32>
    %11 = vector.broadcast %1 : vector<1x8xi32> to vector<4x8xi32>
    %12 = arith.cmpi eq, %10, %11 : vector<4x8xi32>
    %cst_6 = arith.constant 0.000000e+00 : f32
    %13 = vector.broadcast %cst_6 : f32 to vector<4x8xf32>
    %14 = arith.select %12, %0, %13 : vector<4x8xi1>, vector<4x8xf32>
    %cst_7 = arith.constant dense<0.000000e+00> : vector<8xf32>
    %15 = vector.multi_reduction <add>, %14, %cst_7 [0] : vector<4x8xf32> to vector<8xf32>
    %16 = vector.shape_cast %15 : vector<8xf32> to vector<1x8xf32>
    %17 = arith.subf %16, %4 : vector<1x8xf32>
    %18 = math.log %9 : vector<1x8xf32>
    %19 = arith.subf %17, %18 : vector<1x8xf32>
    %20 = math.exp %19 : vector<1x8xf32>
    %cst_8 = arith.constant 1.000000e+00 : f32
    %21 = vector.broadcast %cst_8 : f32 to vector<1x8xf32>
    %22 = arith.subf %21, %20 : vector<1x8xf32>
    %23 = arith.mulf %22, %22 : vector<1x8xf32>
    %cst_9 = arith.constant 0.000000e+00 : f32
    %24 = vector.broadcast %cst_9 : f32 to vector<1x8xf32>
    %25 = arith.subf %24, %2 : vector<1x8xf32>
    %26 = arith.mulf %25, %23 : vector<1x8xf32>
    %27 = arith.mulf %26, %19 : vector<1x8xf32>
    %c8_i32 = arith.constant 8 : i32
    %28 = arith.muli %arg0, %c8_i32 : i32
    %29 = tpu.iota {dimensions = array<i32: 1>} : vector<1x8xi32>
    %30 = vector.broadcast %28 : i32 to vector<1x8xi32>
    %31 = arith.addi %30, %29 : vector<1x8xi32>
    %c8_i32_10 = arith.constant 8 : i32
    %32 = vector.broadcast %c8_i32_10 : i32 to vector<1x8xi32>
    %33 = arith.cmpi slt, %31, %32 : vector<1x8xi32>
    %cst_11 = arith.constant 0.000000e+00 : f32
    %34 = vector.broadcast %cst_11 : f32 to vector<1x8xf32>
    %35 = arith.select %33, %27, %34 : vector<1x8xi1>, vector<1x8xf32>
    %c0_12 = arith.constant 0 : index
    %c0_13 = arith.constant 0 : index
    %36 = vector.load %arg4[%c0_12, %c0_13] : memref<1x8xf32, #tpu.memory_space<vmem>>, vector<1x8xf32>
    tpu.vector_store %arg4[%c0_12, %c0_13], %35 {strides = array<i32>} : memref<1x8xf32, #tpu.memory_space<vmem>>, vector<1x8xf32>,
    return
  }
  func.func @transform_0(%arg0: i32) -> (i32, i32) {
    %c0_i32 = arith.constant 0 : i32
    %c0_i32_0 = arith.constant 0 : i32
    return %c0_i32, %arg0 : i32, i32
  }
  func.func @transform_1(%arg0: i32) -> (i32, i32) {
    %c0_i32 = arith.constant 0 : i32
    %c0_i32_0 = arith.constant 0 : i32
    return %c0_i32, %arg0 : i32, i32
  }
  func.func @transform_2(%arg0: i32) -> (i32, i32) {
    %c0_i32 = arith.constant 0 : i32
    %c0_i32_0 = arith.constant 0 : i32
    return %c0_i32, %arg0 : i32, i32
  }
  func.func @transform_3(%arg0: i32) -> (i32, i32) {
    %c0_i32 = arith.constant 0 : i32
    %c0_i32_0 = arith.constant 0 : i32
    return %c0_i32, %arg0 : i32, i32
  }
}

</mosaic_0001>

<llo_original>
// kernel: tpu_custom_call.1
$region0: #{tpu_custom_call.1}
  #allocation0 [shape = 'u32[]', space=smem, size = 0x4, offset = 0x4, fixed_abs, tag = 'smem constant byte address 0x4 - core index']
  #allocation1 [shape = 'u32[72,128]{1,0:T(1,128)}', space=vmem, size = 0x9000, scoped, tag = 'internal scratch']
  %s0 = inlined_call_operand.hbm [shape: f32[4,8], index: 0, kind: input, shape index: {}]
  %s1 = inlined_call_operand.hbm [shape: s32[1,8], index: 1, kind: input, shape index: {}]
  %s2 = inlined_call_operand.vmem [shape: f32[1,8], index: 2, kind: input, shape index: {}]
  %s3 = inlined_call_operand.hbm [shape: f32[1,8], index: 3, kind: output, shape index: {}]
  %s4 = sld [smem:[#allocation0]]
  $region30: #{tpu_custom_call.1} parent=0
    _
  %s6 = ssub.s32 1, %s4
  %s7 = scalar_select 0, %s6, %s4
  $region1: #{tpu_custom_call.1} parent=0
    #allocation2 [shape = 'u8[2048]{0}', space=vmem, size = 0x800, scoped, tag = 'input window, operand 0, single buffered']
    #allocation3 [shape = 's32[1]{0}', space=sflag, size = 0x4, scoped, tag = 'scoped memory for tpu_custom_call.1']
    #allocation4 [shape = 's32[1]{0}', space=sflag, size = 0x4, scoped, tag = 'scoped memory for tpu_custom_call.1']
    #allocation5 [shape = 'u8[512]{0}', space=vmem, size = 0x400, scoped, tag = 'input window, operand 1, single buffered']
    #allocation6 [shape = 's32[1]{0}', space=sflag, size = 0x4, scoped, tag = 'scoped memory for tpu_custom_call.1']
    #allocation7 [shape = 'u8[512]{0}', space=vmem, size = 0x400, scoped, tag = 'output window, operand 0, single buffered']
    %8 = vsyncpa [#allocation3], 0
    %9 = vsyncpa [#allocation6], 0
    %10 = vsyncpa [#allocation4], 0
    // Predicated region
    $region2: #{tpu_custom_call.1} parent=1 // pred_check
      _
    $region3: #{tpu_custom_call.1} parent=1 // pred_check_branch
      %12 = sbr.rel (0) target = $region5
    $region4: #{tpu_custom_call.1} parent=1 // pred_region
      %14 = vsyncadd [#allocation3], 0
      %s16 = sshll.u32 %s0, 4
      %s17 = int_to_ptr.hbm [resolvable:$true] %s16
      %s18 = sshll.u32 [#allocation2], 4
      %s19 = int_to_ptr.vmem [resolvable:$true] %s18
      %21 = dma.hbm_to_vmem [thread:$0]  %s17, 64, %s19, [#allocation3]
    $region5: #{tpu_custom_call.1} parent=1 // pred_fallthru
      _
    // Predicated region
    $region6: #{tpu_custom_call.1} parent=1 // pred_check
      _
    $region7: #{tpu_custom_call.1} parent=1 // pred_check_branch
      %23 = sbr.rel (0) target = $region9
    $region8: #{tpu_custom_call.1} parent=1 // pred_region
      %25 = vsyncadd [#allocation6], 0
      %s27 = sshll.u32 %s1, 4
      %s28 = int_to_ptr.hbm [resolvable:$true] %s27
      %s29 = sshll.u32 [#allocation5], 4
      %s30 = int_to_ptr.vmem [resolvable:$true] %s29
      %32 = dma.hbm_to_vmem [thread:$0]  %s28, 16, %s30, [#allocation6]
    $region9: #{tpu_custom_call.1} parent=1 // pred_fallthru
      _
    // Predicated region
    $region10: #{tpu_custom_call.1} parent=1 // pred_check
      _
    $region11: #{tpu_custom_call.1} parent=1 // pred_check_branch
      %34 = sbr.rel (0) target = $region13
    $region12: #{tpu_custom_call.1} parent=1 // pred_region
      _
    $region13: #{tpu_custom_call.1} parent=1 // pred_fallthru
      _
    // Predicated region
    $region14: #{tpu_custom_call.1} parent=1 // pred_check
      _
    $region15: #{tpu_custom_call.1} parent=1 // pred_check_branch
      %36 = sbr.rel (0) target = $region17
    $region16: #{tpu_custom_call.1} parent=1 // pred_region
      %38 = dma.done [#allocation3], 64
    $region17: #{tpu_custom_call.1} parent=1 // pred_fallthru
      _
    // Predicated region
    $region18: #{tpu_custom_call.1} parent=1 // pred_check
      _
    $region19: #{tpu_custom_call.1} parent=1 // pred_check_branch
      %40 = sbr.rel (0) target = $region21
    $region20: #{tpu_custom_call.1} parent=1 // pred_region
      %42 = dma.done [#allocation6], 16
    $region21: #{tpu_custom_call.1} parent=1 // pred_fallthru
      _
    %v43 = vld [vmem:[#allocation2] sm:$0xf]
    %v44 = vld [vmem:[#allocation5] sm:$0x1]
    %v45 = vld [vmem:[%s2] sm:$0x1]
    %vm46 = vcmask 60416
    %v47 = vsel %vm46, %v43, -inf
    %v48 = vrot.slane %v47, 4
    %v49 = vmax.f32 %v47, %v48
    %v50 = vrot.slane %v49, 2
    %v51 = vmax.f32 %v49, %v50
    %v52 = vrot.slane %v51, 1
    %v53 = vmax.f32 %v51, %v52
    %v54 = vsub.f32 %v43, %v53
    %v55 = vmul.f32 %v54, 1.442695
    %v56 = vpow.pop %v55
    %v57 = vsel %vm46, %v56, 0.0
    %v58 = vrot.slane %v57, 4
    %v59 = vadd.f32 %v57, %v58
    %v60 = vrot.slane %v59, 2
    %v61 = vadd.f32 %v59, %v60
    %v62 = vrot.slane %v61, 1
    %v63 = vadd.f32 %v61, %v62
    %v64 = vlaneseq
    %v65 = vshrl.u32 %v64, 7
    %v66 = vperm.slane %v44, 0
    %vm67 = vcmp.eq.s32.totalorder %v65, %v66
    %v68 = vsel %vm67, %v43, 0.0
    %v69 = vsel %vm46, %v68, 0.0
    %v70 = vrot.slane %v69, 4
    %v71 = vadd.f32 %v69, %v70
    %v72 = vrot.slane %v71, 2
    %v73 = vadd.f32 %v71, %v72
    %v74 = vrot.slane %v73, 1
    %v75 = vadd.f32 %v73, %v74
    %v76 = vsub.f32 %v75, %v53
    %v77 = vlog2.pop %v63
    %v78 = vmul.f32 %v77, 0.6931472
    %v79 = vsub.f32 %v76, %v78
    %v80 = vmul.f32 %v79, 1.442695
    %v81 = vpow.pop %v80
    %v82 = vsub.f32 1.0, %v81
    %v83 = vmul.f32 %v82, %v82
    %v84 = vsub.f32 0.0, %v45
    %v85 = vmul.f32 %v84, %v83
    %v86 = vmul.f32 %v85, %v79
    %s87 = smul.u32 0, 8
    %v88 = vlaneseq
    %v89 = vand.u32 %v88, 127
    %v90 = vstv %s87
    %v91 = vadd.s32 %v90, %v89
    %vm92 = vcmp.lt.s32.totalorder %v91, 8
    %v93 = vsel %vm92, %v86, 0.0
    %vm94 = vcmask 57344
    %95 = vst.msk [vmem:[#allocation7] sm:$0x1] %vm94, %v93
    // Predicated region
    $region22: #{tpu_custom_call.1} parent=1 // pred_check
      _
    $region23: #{tpu_custom_call.1} parent=1 // pred_check_branch
      %97 = sbr.rel (0) target = $region25
    $region24: #{tpu_custom_call.1} parent=1 // pred_region
      %99 = vsyncadd [#allocation4], 0
      %s101 = sshll.u32 [#allocation7], 4
      %s102 = int_to_ptr.vmem [resolvable:$true] %s101
      %s103 = sshll.u32 %s3, 4
      %s104 = int_to_ptr.hbm [resolvable:$true] %s103
      %106 = dma.vmem_to_hbm [thread:$0]  %s102, 16, %s104, [#allocation4]
    $region25: #{tpu_custom_call.1} parent=1 // pred_fallthru
      _
    // Predicated region
    $region26: #{tpu_custom_call.1} parent=1 // pred_check
      _
    $region27: #{tpu_custom_call.1} parent=1 // pred_check_branch
      %108 = sbr.rel (0) target = $region29
    $region28: #{tpu_custom_call.1} parent=1 // pred_region
      %110 = dma.done [#allocation4], 16
    $region29: #{tpu_custom_call.1} parent=1 // pred_fallthru
      _
    %111 = vsyncpa [#allocation3], 1
    %112 = vsyncpa [#allocation6], 1
    %113 = vsyncpa [#allocation4], 1

</llo_original>
